<compile_context>
chip_gen: v7x
topology: tpu7x:2x2x1
jax: 0.10.0
libtpu: 0.0.40
codegen_flags: <defaults>
</compile_context>

<pallas_src>
import functools

import jax
import jax.numpy as jnp
from jax.experimental import pallas as pl
from jax.experimental.pallas import tpu as pltpu


def ae_kernel(x_ref,
              we1_ref, be1_ref, we2_ref, be2_ref, we3_ref, be3_ref,
              wd1_ref, bd1_ref, wd2_ref, bd2_ref, wd3_ref, bd3_ref,
              out_ref):
    x = x_ref[...]

    # ----- Encoder: Linear -> ReLU -> Linear -> ReLU -> Linear -----
    h = jnp.dot(x, we1_ref[...], preferred_element_type=jnp.float32) + be1_ref[...]
    h = jnp.maximum(h, 0.0)
    h = jnp.dot(h, we2_ref[...], preferred_element_type=jnp.float32) + be2_ref[...]
    h = jnp.maximum(h, 0.0)
    encoded = jnp.dot(h, we3_ref[...], preferred_element_type=jnp.float32) + be3_ref[...]

    # ----- Decoder: Linear -> ReLU -> Linear -> ReLU -> Linear -----
    d = jnp.dot(encoded, wd1_ref[...], preferred_element_type=jnp.float32) + bd1_ref[...]
    d = jnp.maximum(d, 0.0)
    d = jnp.dot(d, wd2_ref[...], preferred_element_type=jnp.float32) + bd2_ref[...]
    d = jnp.maximum(d, 0.0)
    decoded = jnp.dot(d, wd3_ref[...], preferred_element_type=jnp.float32) + bd3_ref[...]

    # Single lane-dense packed output slab: [encoded | decoded]
    out_ref[...] = jnp.concatenate([encoded, decoded], axis=-1)


@functools.partial(jax.jit, static_argnames=("latent_dim",))
def ae_forward(x, params, *, latent_dim):
    """Runs the full autoencoder forward; returns (encoded, decoded)."""
    B, start_dim = x.shape

    # ----- batch tiling -----
    # Large tiles amortize the ~0.35us/step overhead; per-row VMEM footprint is tiny,
    # so this comfortably fits v7x's 64 MiB VMEM even double-buffered.
    TB = min(1024, max(8, -(-B // 8) * 8))          # multiple of 8, capped at 1024
    B_pad = pl.cdiv(B, TB) * TB
    if B_pad != B:
        x = jnp.pad(x, ((0, B_pad - B), (0, 0)))
    n_tiles = B_pad // TB

    weight_args = (
        params["we1"], params["be1"],
        params["we2"], params["be2"],
        params["we3"], params["be3"],
        params["wd1"], params["bd1"],
        params["wd2"], params["bd2"],
        params["wd3"], params["bd3"],
    )

    # Activations: tiled over batch. Weights/biases: full block, resident across steps.
    x_spec = pl.BlockSpec((TB, start_dim), lambda i: (i, 0))
    w_specs = [pl.BlockSpec(w.shape, lambda i: (0, 0)) for w in weight_args]
    out_width = latent_dim + start_dim
    out_spec = pl.BlockSpec((TB, out_width), lambda i: (i, 0))

    # Advisory cost hint (4+2 matmuls, no transcendentals).
    h1 = params["we1"].shape[1]
    h2 = params["we2"].shape[1]
    flops = 2 * B_pad * (start_dim * h1 + h1 * h2 + h2 * latent_dim
                         + latent_dim * h2 + h2 * h1 + h1 * start_dim)
    bytes_accessed = 4 * (x.size + out_width * B_pad
                          + sum(int(w.size) for w in weight_args))
    cost = pl.CostEstimate(flops=flops, transcendentals=0,
                           bytes_accessed=bytes_accessed)

    packed = pl.pallas_call(
        ae_kernel,
        out_shape=jax.ShapeDtypeStruct((B_pad, out_width), jnp.float32),
        grid=(n_tiles,),
        in_specs=[x_spec] + w_specs,
        out_specs=out_spec,
        compiler_params=pltpu.CompilerParams(
            dimension_semantics=("parallel",)),
        cost_estimate=cost,
    )(x, *weight_args)

    encoded = packed[:B, :latent_dim]
    decoded = packed[:B, latent_dim:]
    return encoded, decoded


def ae_dims(start_dim, latent_dim):
    middle_dim = (start_dim + latent_dim) / 2.0
    hidden_dim_1 = int((start_dim + middle_dim) / 2)
    hidden_dim_2 = int((middle_dim + latent_dim) / 2)
    return hidden_dim_1, hidden_dim_2


def init_params(key, start_dim, latent_dim):
    """Deterministic init mimicking PyTorch Linear default (uniform +/- 1/sqrt(fan_in)).
    Weights are stored transposed: (in_features, out_features)."""
    h1, h2 = ae_dims(start_dim, latent_dim)

    def linear(k, fan_in, fan_out):
        kw, kb = jax.random.split(k)
        bound = 1.0 / jnp.sqrt(float(fan_in))
        w = jax.random.uniform(kw, (fan_in, fan_out), jnp.float32, -bound, bound)
        b = jax.random.uniform(kb, (1, fan_out), jnp.float32, -bound, bound)
        return w, b

    keys = jax.random.split(key, 6)
    we1, be1 = linear(keys[0], start_dim, h1)    # encoder[0]
    we2, be2 = linear(keys[1], h1, h2)           # encoder[2]
    we3, be3 = linear(keys[2], h2, latent_dim)   # encoder[4]
    wd1, bd1 = linear(keys[3], latent_dim, h2)   # decoder[0]
    wd2, bd2 = linear(keys[4], h2, h1)           # decoder[2]
    wd3, bd3 = linear(keys[5], h1, start_dim)    # decoder[4]
    return dict(we1=we1, be1=be1, we2=we2, be2=be2, we3=we3, be3=be3,
                wd1=wd1, bd1=bd1, wd2=wd2, bd2=bd2, wd3=wd3, bd3=bd3)


def ae_reference(x, p):
    """Pure-JAX reference for correctness checking."""
    h = jax.nn.relu(x @ p["we1"] + p["be1"])
    h = jax.nn.relu(h @ p["we2"] + p["be2"])
    encoded = h @ p["we3"] + p["be3"]
    d = jax.nn.relu(encoded @ p["wd1"] + p["bd1"])
    d = jax.nn.relu(d @ p["wd2"] + p["bd2"])
    decoded = d @ p["wd3"] + p["bd3"]
    return encoded, decoded


if __name__ == "__main__":
    start_dim = 48
    latent_dim = 16
    batch = 8

    key = jax.random.PRNGKey(0)
    k_x, k_p = jax.random.split(key)

    x = jax.random.normal(k_x, (batch, start_dim), jnp.float32)
    params = init_params(k_p, start_dim, latent_dim)

    encoded, decoded = ae_forward(x, params, latent_dim=latent_dim)
    jax.block_until_ready(decoded)

    enc_r, dec_r = ae_reference(x, params)
    assert jnp.allclose(encoded, enc_r, atol=1e-5), "encoded mismatch"
    assert jnp.allclose(decoded, dec_r, atol=1e-5), "decoded mismatch"

    print("KERNEL_OK")
</pallas_src>

<mosaic_0001>
module attributes {stable_mosaic.version = 11 : i64} {
  func.func @ae_kernel(%arg0: i32, %arg1: memref<8x48xf32, #tpu.memory_space<vmem>>, %arg2: memref<48x40xf32, #tpu.memory_space<vmem>>, %arg3: memref<1x40xf32, #tpu.memory_space<vmem>>, %arg4: memref<40x24xf32, #tpu.memory_space<vmem>>, %arg5: memref<1x24xf32, #tpu.memory_space<vmem>>, %arg6: memref<24x16xf32, #tpu.memory_space<vmem>>, %arg7: memref<1x16xf32, #tpu.memory_space<vmem>>, %arg8: memref<16x24xf32, #tpu.memory_space<vmem>>, %arg9: memref<1x24xf32, #tpu.memory_space<vmem>>, %arg10: memref<24x40xf32, #tpu.memory_space<vmem>>, %arg11: memref<1x40xf32, #tpu.memory_space<vmem>>, %arg12: memref<40x48xf32, #tpu.memory_space<vmem>>, %arg13: memref<1x48xf32, #tpu.memory_space<vmem>>, %arg14: memref<8x64xf32, #tpu.memory_space<vmem>>) attributes {dimension_semantics = [#tpu.dimension_semantics<parallel>], iteration_bounds = array<i64: 1>, scalar_prefetch = 0 : i64, scratch_operands = 0 : i64, tpu.core_type = #tpu.core_type<tc>, window_params = [{transform_indices = @transform_0, window_bounds = array<i64: 8, 48>}, {pipeline_mode = #tpu.pipeline_mode<synchronous>, transform_indices = @transform_1, window_bounds = array<i64: 48, 40>}, {pipeline_mode = #tpu.pipeline_mode<synchronous>, transform_indices = @transform_2, window_bounds = array<i64: 1, 40>}, {pipeline_mode = #tpu.pipeline_mode<synchronous>, transform_indices = @transform_3, window_bounds = array<i64: 40, 24>}, {pipeline_mode = #tpu.pipeline_mode<synchronous>, transform_indices = @transform_4, window_bounds = array<i64: 1, 24>}, {pipeline_mode = #tpu.pipeline_mode<synchronous>, transform_indices = @transform_5, window_bounds = array<i64: 24, 16>}, {pipeline_mode = #tpu.pipeline_mode<synchronous>, transform_indices = @transform_6, window_bounds = array<i64: 1, 16>}, {pipeline_mode = #tpu.pipeline_mode<synchronous>, transform_indices = @transform_7, window_bounds = array<i64: 16, 24>}, {pipeline_mode = #tpu.pipeline_mode<synchronous>, transform_indices = @transform_8, window_bounds = array<i64: 1, 24>}, {pipeline_mode = #tpu.pipeline_mode<synchronous>, transform_indices = @transform_9, window_bounds = array<i64: 24, 40>}, {pipeline_mode = #tpu.pipeline_mode<synchronous>, transform_indices = @transform_10, window_bounds = array<i64: 1, 40>}, {pipeline_mode = #tpu.pipeline_mode<synchronous>, transform_indices = @transform_11, window_bounds = array<i64: 40, 48>}, {pipeline_mode = #tpu.pipeline_mode<synchronous>, transform_indices = @transform_12, window_bounds = array<i64: 1, 48>}, {transform_indices = @transform_13, window_bounds = array<i64: 8, 64>}]} {
    %c0 = arith.constant 0 : index
    %c0_0 = arith.constant 0 : index
    %0 = vector.load %arg1[%c0, %c0_0] : memref<8x48xf32, #tpu.memory_space<vmem>>, vector<8x48xf32>
    %c0_1 = arith.constant 0 : index
    %c0_2 = arith.constant 0 : index
    %1 = vector.load %arg2[%c0_1, %c0_2] : memref<48x40xf32, #tpu.memory_space<vmem>>, vector<48x40xf32>
    %cst = arith.constant dense<0.000000e+00> : vector<8x40xf32>
    %2 = tpu.matmul %0, %1, %cst {dimension_numbers = #tpu.dot_dimension_numbers<[1], [0], [0], [1], [0, 0, 1, 1], [], []>} : vector<8x48xf32>, vector<48x40xf32>, vector<8x40xf32> -> vector<8x40xf32>
    %c0_3 = arith.constant 0 : index
    %c0_4 = arith.constant 0 : index
    %3 = vector.load %arg3[%c0_3, %c0_4] : memref<1x40xf32, #tpu.memory_space<vmem>>, vector<1x40xf32>
    %4 = vector.broadcast %3 : vector<1x40xf32> to vector<8x40xf32>
    %5 = arith.addf %2, %4 : vector<8x40xf32>
    %cst_5 = arith.constant 0.000000e+00 : f32
    %6 = vector.broadcast %cst_5 : f32 to vector<8x40xf32>
    %7 = arith.maximumf %5, %6 : vector<8x40xf32>
    %c0_6 = arith.constant 0 : index
    %c0_7 = arith.constant 0 : index
    %8 = vector.load %arg4[%c0_6, %c0_7] : memref<40x24xf32, #tpu.memory_space<vmem>>, vector<40x24xf32>
    %cst_8 = arith.constant dense<0.000000e+00> : vector<8x24xf32>
    %9 = tpu.matmul %7, %8, %cst_8 {dimension_numbers = #tpu.dot_dimension_numbers<[1], [0], [0], [1], [0, 0, 1, 1], [], []>} : vector<8x40xf32>, vector<40x24xf32>, vector<8x24xf32> -> vector<8x24xf32>
    %c0_9 = arith.constant 0 : index
    %c0_10 = arith.constant 0 : index
    %10 = vector.load %arg5[%c0_9, %c0_10] : memref<1x24xf32, #tpu.memory_space<vmem>>, vector<1x24xf32>
    %11 = vector.broadcast %10 : vector<1x24xf32> to vector<8x24xf32>
    %12 = arith.addf %9, %11 : vector<8x24xf32>
    %cst_11 = arith.constant 0.000000e+00 : f32
    %13 = vector.broadcast %cst_11 : f32 to vector<8x24xf32>
    %14 = arith.maximumf %12, %13 : vector<8x24xf32>
    %c0_12 = arith.constant 0 : index
    %c0_13 = arith.constant 0 : index
    %15 = vector.load %arg6[%c0_12, %c0_13] : memref<24x16xf32, #tpu.memory_space<vmem>>, vector<24x16xf32>
    %cst_14 = arith.constant dense<0.000000e+00> : vector<8x16xf32>
    %16 = tpu.matmul %14, %15, %cst_14 {dimension_numbers = #tpu.dot_dimension_numbers<[1], [0], [0], [1], [0, 0, 1, 1], [], []>} : vector<8x24xf32>, vector<24x16xf32>, vector<8x16xf32> -> vector<8x16xf32>
    %c0_15 = arith.constant 0 : index
    %c0_16 = arith.constant 0 : index
    %17 = vector.load %arg7[%c0_15, %c0_16] : memref<1x16xf32, #tpu.memory_space<vmem>>, vector<1x16xf32>
    %18 = vector.broadcast %17 : vector<1x16xf32> to vector<8x16xf32>
    %19 = arith.addf %16, %18 : vector<8x16xf32>
    %c0_17 = arith.constant 0 : index
    %c0_18 = arith.constant 0 : index
    %20 = vector.load %arg8[%c0_17, %c0_18] : memref<16x24xf32, #tpu.memory_space<vmem>>, vector<16x24xf32>
    %cst_19 = arith.constant dense<0.000000e+00> : vector<8x24xf32>
    %21 = tpu.matmul %19, %20, %cst_19 {dimension_numbers = #tpu.dot_dimension_numbers<[1], [0], [0], [1], [0, 0, 1, 1], [], []>} : vector<8x16xf32>, vector<16x24xf32>, vector<8x24xf32> -> vector<8x24xf32>
    %c0_20 = arith.constant 0 : index
    %c0_21 = arith.constant 0 : index
    %22 = vector.load %arg9[%c0_20, %c0_21] : memref<1x24xf32, #tpu.memory_space<vmem>>, vector<1x24xf32>
    %23 = vector.broadcast %22 : vector<1x24xf32> to vector<8x24xf32>
    %24 = arith.addf %21, %23 : vector<8x24xf32>
    %cst_22 = arith.constant 0.000000e+00 : f32
    %25 = vector.broadcast %cst_22 : f32 to vector<8x24xf32>
    %26 = arith.maximumf %24, %25 : vector<8x24xf32>
    %c0_23 = arith.constant 0 : index
    %c0_24 = arith.constant 0 : index
    %27 = vector.load %arg10[%c0_23, %c0_24] : memref<24x40xf32, #tpu.memory_space<vmem>>, vector<24x40xf32>
    %cst_25 = arith.constant dense<0.000000e+00> : vector<8x40xf32>
    %28 = tpu.matmul %26, %27, %cst_25 {dimension_numbers = #tpu.dot_dimension_numbers<[1], [0], [0], [1], [0, 0, 1, 1], [], []>} : vector<8x24xf32>, vector<24x40xf32>, vector<8x40xf32> -> vector<8x40xf32>
    %c0_26 = arith.constant 0 : index
    %c0_27 = arith.constant 0 : index
    %29 = vector.load %arg11[%c0_26, %c0_27] : memref<1x40xf32, #tpu.memory_space<vmem>>, vector<1x40xf32>
    %30 = vector.broadcast %29 : vector<1x40xf32> to vector<8x40xf32>
    %31 = arith.addf %28, %30 : vector<8x40xf32>
    %cst_28 = arith.constant 0.000000e+00 : f32
    %32 = vector.broadcast %cst_28 : f32 to vector<8x40xf32>
    %33 = arith.maximumf %31, %32 : vector<8x40xf32>
    %c0_29 = arith.constant 0 : index
    %c0_30 = arith.constant 0 : index
    %34 = vector.load %arg12[%c0_29, %c0_30] : memref<40x48xf32, #tpu.memory_space<vmem>>, vector<40x48xf32>
    %cst_31 = arith.constant dense<0.000000e+00> : vector<8x48xf32>
    %35 = tpu.matmul %33, %34, %cst_31 {dimension_numbers = #tpu.dot_dimension_numbers<[1], [0], [0], [1], [0, 0, 1, 1], [], []>} : vector<8x40xf32>, vector<40x48xf32>, vector<8x48xf32> -> vector<8x48xf32>
    %c0_32 = arith.constant 0 : index
    %c0_33 = arith.constant 0 : index
    %36 = vector.load %arg13[%c0_32, %c0_33] : memref<1x48xf32, #tpu.memory_space<vmem>>, vector<1x48xf32>
    %37 = vector.broadcast %36 : vector<1x48xf32> to vector<8x48xf32>
    %38 = arith.addf %35, %37 : vector<8x48xf32>
    %39 = tpu.concatenate %19, %38 in 1 : vector<8x16xf32>, vector<8x48xf32> -> vector<8x64xf32>
    %c0_34 = arith.constant 0 : index
    %c0_35 = arith.constant 0 : index
    %40 = vector.load %arg14[%c0_34, %c0_35] : memref<8x64xf32, #tpu.memory_space<vmem>>, vector<8x64xf32>
    tpu.vector_store %arg14[%c0_34, %c0_35], %39 {strides = array<i32>} : memref<8x64xf32, #tpu.memory_space<vmem>>, vector<8x64xf32>,
    return
  }
  func.func @transform_0(%arg0: i32) -> (i32, i32) {
    %c0_i32 = arith.constant 0 : i32
    %c0_i32_0 = arith.constant 0 : i32
    return %arg0, %c0_i32 : i32, i32
  }
  func.func @transform_1(%arg0: i32) -> (i32, i32) {
    %c0_i32 = arith.constant 0 : i32
    %c0_i32_0 = arith.constant 0 : i32
    %c0_i32_1 = arith.constant 0 : i32
    return %c0_i32, %c0_i32_0 : i32, i32
  }
  func.func @transform_2(%arg0: i32) -> (i32, i32) {
    %c0_i32 = arith.constant 0 : i32
    %c0_i32_0 = arith.constant 0 : i32
    %c0_i32_1 = arith.constant 0 : i32
    return %c0_i32, %c0_i32_0 : i32, i32
  }
  func.func @transform_3(%arg0: i32) -> (i32, i32) {
    %c0_i32 = arith.constant 0 : i32
    %c0_i32_0 = arith.constant 0 : i32
    %c0_i32_1 = arith.constant 0 : i32
    return %c0_i32, %c0_i32_0 : i32, i32
  }
  func.func @transform_4(%arg0: i32) -> (i32, i32) {
    %c0_i32 = arith.constant 0 : i32
    %c0_i32_0 = arith.constant 0 : i32
    %c0_i32_1 = arith.constant 0 : i32
    return %c0_i32, %c0_i32_0 : i32, i32
  }
  func.func @transform_5(%arg0: i32) -> (i32, i32) {
    %c0_i32 = arith.constant 0 : i32
    %c0_i32_0 = arith.constant 0 : i32
    %c0_i32_1 = arith.constant 0 : i32
    return %c0_i32, %c0_i32_0 : i32, i32
  }
  func.func @transform_6(%arg0: i32) -> (i32, i32) {
    %c0_i32 = arith.constant 0 : i32
    %c0_i32_0 = arith.constant 0 : i32
    %c0_i32_1 = arith.constant 0 : i32
    return %c0_i32, %c0_i32_0 : i32, i32
  }
  func.func @transform_7(%arg0: i32) -> (i32, i32) {
    %c0_i32 = arith.constant 0 : i32
    %c0_i32_0 = arith.constant 0 : i32
    %c0_i32_1 = arith.constant 0 : i32
    return %c0_i32, %c0_i32_0 : i32, i32
  }
  func.func @transform_8(%arg0: i32) -> (i32, i32) {
    %c0_i32 = arith.constant 0 : i32
    %c0_i32_0 = arith.constant 0 : i32
    %c0_i32_1 = arith.constant 0 : i32
    return %c0_i32, %c0_i32_0 : i32, i32
  }
  func.func @transform_9(%arg0: i32) -> (i32, i32) {
    %c0_i32 = arith.constant 0 : i32
    %c0_i32_0 = arith.constant 0 : i32
    %c0_i32_1 = arith.constant 0 : i32
    return %c0_i32, %c0_i32_0 : i32, i32
  }
  func.func @transform_10(%arg0: i32) -> (i32, i32) {
    %c0_i32 = arith.constant 0 : i32
    %c0_i32_0 = arith.constant 0 : i32
    %c0_i32_1 = arith.constant 0 : i32
    return %c0_i32, %c0_i32_0 : i32, i32
  }
  func.func @transform_11(%arg0: i32) -> (i32, i32) {
    %c0_i32 = arith.constant 0 : i32
    %c0_i32_0 = arith.constant 0 : i32
    %c0_i32_1 = arith.constant 0 : i32
    return %c0_i32, %c0_i32_0 : i32, i32
  }
  func.func @transform_12(%arg0: i32) -> (i32, i32) {
    %c0_i32 = arith.constant 0 : i32
    %c0_i32_0 = arith.constant 0 : i32
    %c0_i32_1 = arith.constant 0 : i32
    return %c0_i32, %c0_i32_0 : i32, i32
  }
  func.func @transform_13(%arg0: i32) -> (i32, i32) {
    %c0_i32 = arith.constant 0 : i32
    %c0_i32_0 = arith.constant 0 : i32
    return %arg0, %c0_i32 : i32, i32
  }
}

</mosaic_0001>

<llo_original>
// kernel: ae_forward.1
$region0: #{ae_forward.1}
  #allocation0 [shape = 'u32[]', space=smem, size = 0x4, offset = 0x4, fixed_abs, tag = 'smem constant byte address 0x4 - core index']
  #allocation1 [shape = 'u32[144,128]{1,0:T(1,128)}', space=vmem, size = 0x12000, scoped, tag = 'internal scratch']
  %s0 = inlined_call_operand.vmem [shape: f32[8,48], index: 0, kind: input, shape index: {}]
  %s1 = inlined_call_operand.vmem [shape: f32[48,40], index: 1, kind: input, shape index: {}]
  %s2 = inlined_call_operand.vmem [shape: f32[1,40], index: 2, kind: input, shape index: {}]
  %s3 = inlined_call_operand.vmem [shape: f32[40,24], index: 3, kind: input, shape index: {}]
  %s4 = inlined_call_operand.vmem [shape: f32[1,24], index: 4, kind: input, shape index: {}]
  %s5 = inlined_call_operand.vmem [shape: f32[24,16], index: 5, kind: input, shape index: {}]
  %s6 = inlined_call_operand.vmem [shape: f32[1,16], index: 6, kind: input, shape index: {}]
  %s7 = inlined_call_operand.vmem [shape: f32[16,24], index: 7, kind: input, shape index: {}]
  %s8 = inlined_call_operand.vmem [shape: f32[1,24], index: 8, kind: input, shape index: {}]
  %s9 = inlined_call_operand.vmem [shape: f32[24,40], index: 9, kind: input, shape index: {}]
  %s10 = inlined_call_operand.vmem [shape: f32[1,40], index: 10, kind: input, shape index: {}]
  %s11 = inlined_call_operand.vmem [shape: f32[40,48], index: 11, kind: input, shape index: {}]
  %s12 = inlined_call_operand.vmem [shape: f32[1,48], index: 12, kind: input, shape index: {}]
  %s13 = inlined_call_operand.vmem [shape: f32[8,64], index: 13, kind: output, shape index: {}]
  %s14 = sld [smem:[#allocation0]]
  $region62: #{ae_forward.1} parent=0
    _
  %s16 = ssub.s32 1, %s14
  %s17 = scalar_select 0, %s16, %s14
  // Predicated region
  $region2: #{ae_forward.1} parent=0 // pred_check
    _
  $region3: #{ae_forward.1} parent=0 // pred_check_branch
    %19 = sbr.rel (0) target = $region5
  $region4: #{ae_forward.1} parent=0 // pred_region
    _
  $region5: #{ae_forward.1} parent=0 // pred_fallthru
    _
  // Predicated region
  $region6: #{ae_forward.1} parent=0 // pred_check
    _
  $region7: #{ae_forward.1} parent=0 // pred_check_branch
    %21 = sbr.rel (0) target = $region9
  $region8: #{ae_forward.1} parent=0 // pred_region
    _
  $region9: #{ae_forward.1} parent=0 // pred_fallthru
    _
  // Predicated region
  $region10: #{ae_forward.1} parent=0 // pred_check
    _
  $region11: #{ae_forward.1} parent=0 // pred_check_branch
    %23 = sbr.rel (0) target = $region13
  $region12: #{ae_forward.1} parent=0 // pred_region
    _
  $region13: #{ae_forward.1} parent=0 // pred_fallthru
    _
  // Predicated region
  $region14: #{ae_forward.1} parent=0 // pred_check
    _
  $region15: #{ae_forward.1} parent=0 // pred_check_branch
    %25 = sbr.rel (0) target = $region17
  $region16: #{ae_forward.1} parent=0 // pred_region
    _
  $region17: #{ae_forward.1} parent=0 // pred_fallthru
    _
  // Predicated region
  $region18: #{ae_forward.1} parent=0 // pred_check
    _
  $region19: #{ae_forward.1} parent=0 // pred_check_branch
    %27 = sbr.rel (0) target = $region21
  $region20: #{ae_forward.1} parent=0 // pred_region
    _
  $region21: #{ae_forward.1} parent=0 // pred_fallthru
    _
  // Predicated region
  $region22: #{ae_forward.1} parent=0 // pred_check
    _
  $region23: #{ae_forward.1} parent=0 // pred_check_branch
    %29 = sbr.rel (0) target = $region25
  $region24: #{ae_forward.1} parent=0 // pred_region
    _
  $region25: #{ae_forward.1} parent=0 // pred_fallthru
    _
  // Predicated region
  $region26: #{ae_forward.1} parent=0 // pred_check
    _
  $region27: #{ae_forward.1} parent=0 // pred_check_branch
    %31 = sbr.rel (0) target = $region29
  $region28: #{ae_forward.1} parent=0 // pred_region
    _
  $region29: #{ae_forward.1} parent=0 // pred_fallthru
    _
  // Predicated region
  $region30: #{ae_forward.1} parent=0 // pred_check
    _
  $region31: #{ae_forward.1} parent=0 // pred_check_branch
    %33 = sbr.rel (0) target = $region33
  $region32: #{ae_forward.1} parent=0 // pred_region
    _
  $region33: #{ae_forward.1} parent=0 // pred_fallthru
    _
  // Predicated region
  $region34: #{ae_forward.1} parent=0 // pred_check
    _
  $region35: #{ae_forward.1} parent=0 // pred_check_branch
    %35 = sbr.rel (0) target = $region37
  $region36: #{ae_forward.1} parent=0 // pred_region
    _
  $region37: #{ae_forward.1} parent=0 // pred_fallthru
    _
  // Predicated region
  $region38: #{ae_forward.1} parent=0 // pred_check
    _
  $region39: #{ae_forward.1} parent=0 // pred_check_branch
    %37 = sbr.rel (0) target = $region41
  $region40: #{ae_forward.1} parent=0 // pred_region
    _
  $region41: #{ae_forward.1} parent=0 // pred_fallthru
    _
  // Predicated region
  $region42: #{ae_forward.1} parent=0 // pred_check
    _
  $region43: #{ae_forward.1} parent=0 // pred_check_branch
    %39 = sbr.rel (0) target = $region45
  $region44: #{ae_forward.1} parent=0 // pred_region
    _
  $region45: #{ae_forward.1} parent=0 // pred_fallthru
    _
  // Predicated region
  $region46: #{ae_forward.1} parent=0 // pred_check
    _
  $region47: #{ae_forward.1} parent=0 // pred_check_branch
    %41 = sbr.rel (0) target = $region49
  $region48: #{ae_forward.1} parent=0 // pred_region
    _
  $region49: #{ae_forward.1} parent=0 // pred_fallthru
    _
  // Predicated region
  $region50: #{ae_forward.1} parent=0 // pred_check
    _
  $region51: #{ae_forward.1} parent=0 // pred_check_branch
    %43 = sbr.rel (0) target = $region53
  $region52: #{ae_forward.1} parent=0 // pred_region
    _
  $region53: #{ae_forward.1} parent=0 // pred_fallthru
    _
  %v44 = vld [vmem:[%s0] sm:$0xff]
  %v45 = vld [vmem:[%s1] sm:$0xff]
  %v46 = vld [vmem:[%s1 + $0x8] sm:$0xff]
  %v47 = vld [vmem:[%s1 + $0x10] sm:$0xff]
  %v48 = vld [vmem:[%s1 + $0x18] sm:$0xff]
  %v49 = vld [vmem:[%s1 + $0x20] sm:$0xff]
  %v50 = vld [vmem:[%s1 + $0x28] sm:$0xff]
  %v51 = vld [vmem:[%s2] sm:$0x1]
  %v53 = vlaneseq
  %v54 = vshrl.u32 %v53, 7
  %v55 = vsub.s32 0, %v54
  %v56 = vrot.slane %v51, %v55
  %vm58 = vcmask 392192
  %v60 = vsel %vm58, %v44, 0
  %62 = vmatprep.subr.mxu0 0.0
  %63 = vmatpush1.msra.mxu0 %v45
  %64 = vmatprep.subr.mxu0 0.0
  %65 = vmatpush1.msra.mxu0 %v46
  %66 = vmatprep.subr.mxu0 0.0
  %67 = vmatpush1.msra.mxu0 %v47
  %68 = vmatprep.subr.mxu0 0.0
  %69 = vmatpush1.msra.mxu0 %v48
  %70 = vmatprep.subr.mxu0 0.0
  %71 = vmatpush1.msra.mxu0 %v49
  %72 = vmatprep.subr.mxu0 0.0
  %73 = vmatpush1.msra.mxu0 %v50
  %74 = vmatprep.subr.mxu0 0.0
  %75 = vmatpush1.msra.mxu0 0.0
  %76 = vmatprep.subr.mxu0 0.0
  %77 = vmatpush1.msra.mxu0 0.0
  %78 = vmatprep.subr.mxu0 0.0
  %79 = vmatpush1.msra.mxu0 0.0
  %80 = vmatprep.subr.mxu0 0.0
  %81 = vmatpush1.msra.mxu0 0.0
  %82 = vmatprep.subr.mxu0 0.0
  %83 = vmatpush1.msra.mxu0 0.0
  %84 = vmatprep.subr.mxu0 0.0
  %85 = vmatpush1.msra.mxu0 0.0
  %86 = vmatprep.subr.mxu0 0.0
  %87 = vmatpush1.msra.mxu0 0.0
  %88 = vmatprep.subr.mxu0 0.0
  %89 = vmatpush1.msra.mxu0 0.0
  %90 = vmatprep.subr.mxu0 0.0
  %91 = vmatpush1.msra.mxu0 0.0
  %92 = vmatprep.subr.mxu0 0.0
  %93 = vmatpush1.msra.mxu0 0.0
  %94 = vmatprep.subr.mxu0 0.0
  %95 = vmatpush1.msra.mxu0 0.0
  %96 = vmatprep.subr.mxu0 0.0
  %97 = vmatpush1.msra.mxu0 0.0
  %98 = vmatprep.subr.mxu0 0.0
  %99 = vmatpush1.msra.mxu0 0.0
  %100 = vmatprep.subr.mxu0 0.0
  %101 = vmatpush1.msra.mxu0 0.0
  %102 = vmatprep.subr.mxu0 0.0
  %103 = vmatpush1.msra.mxu0 0.0
  %104 = vmatprep.subr.mxu0 0.0
  %105 = vmatpush1.msra.mxu0 0.0
  %106 = vmatprep.subr.mxu0 0.0
  %107 = vmatpush1.msra.mxu0 0.0
  %108 = vmatprep.subr.mxu0 0.0
  %109 = vmatpush1.msra.mxu0 0.0
  %110 = vmatprep.subr.mxu0 0.0
  %111 = vmatpush1.msra.mxu0 0.0
  %112 = vmatprep.subr.mxu0 0.0
  %113 = vmatpush1.msra.mxu0 0.0
  %114 = vmatprep.subr.mxu0 0.0
  %115 = vmatpush1.msra.mxu0 0.0
  %116 = vmatprep.subr.mxu0 0.0
  %117 = vmatpush1.msra.mxu0 0.0
  %118 = vmatprep.subr.mxu0 0.0
  %119 = vmatpush1.msra.mxu0 0.0
  %120 = vmatprep.subr.mxu0 0.0
  %121 = vmatpush1.msra.mxu0 0.0
  %122 = vmatprep.subr.mxu0 0.0
  %123 = vmatpush1.msra.mxu0 0.0
  %124 = vmatprep.subr.mxu0 0.0
  %125 = vmatpush1.msra.mxu0 0.0
  %126 = vmatprep.mubr.f32.mxu0 0.0
  %127 = vmatmul.mubr.f32.gmra.mrb[0].mxu0 %v60
  %v128 = vpop.f32.mrb[0].mxu0
  %v129 = vadd.f32 %v56, %v128
  %v130 = vpop.f32.mrb[0].mxu0
  %131 = vdwg.mxu0
  %v132 = vmax.f32 %v129, 0.0
  %v133 = vld [vmem:[%s3] sm:$0xff]
  %v134 = vld [vmem:[%s3 + $0x8] sm:$0xff]
  %v135 = vld [vmem:[%s3 + $0x10] sm:$0xff]
  %v136 = vld [vmem:[%s3 + $0x18] sm:$0xff]
  %v137 = vld [vmem:[%s3 + $0x20] sm:$0xff]
  %v138 = vld [vmem:[%s4] sm:$0x1]
  %v140 = vlaneseq
  %v141 = vshrl.u32 %v140, 7
  %v142 = vsub.s32 0, %v141
  %v143 = vrot.slane %v138, %v142
  %vm145 = vcmask 326656
  %v147 = vsel %vm145, %v132, 0
  %149 = vmatprep.subr.mxu0 0.0
  %150 = vmatpush1.msra.mxu0 %v133
  %151 = vmatprep.subr.mxu0 0.0
  %152 = vmatpush1.msra.mxu0 %v134
  %153 = vmatprep.subr.mxu0 0.0
  %154 = vmatpush1.msra.mxu0 %v135
  %155 = vmatprep.subr.mxu0 0.0
  %156 = vmatpush1.msra.mxu0 %v136
  %157 = vmatprep.subr.mxu0 0.0
  %158 = vmatpush1.msra.mxu0 %v137
  %159 = vmatprep.subr.mxu0 0.0
  %160 = vmatpush1.msra.mxu0 0.0
  %161 = vmatprep.subr.mxu0 0.0
  %162 = vmatpush1.msra.mxu0 0.0
  %163 = vmatprep.subr.mxu0 0.0
  %164 = vmatpush1.msra.mxu0 0.0
  %165 = vmatprep.subr.mxu0 0.0
  %166 = vmatpush1.msra.mxu0 0.0
  %167 = vmatprep.subr.mxu0 0.0
  %168 = vmatpush1.msra.mxu0 0.0
  %169 = vmatprep.subr.mxu0 0.0
  %170 = vmatpush1.msra.mxu0 0.0
  %171 = vmatprep.subr.mxu0 0.0
  %172 = vmatpush1.msra.mxu0 0.0
  %173 = vmatprep.subr.mxu0 0.0
  %174 = vmatpush1.msra.mxu0 0.0
  %175 = vmatprep.subr.mxu0 0.0
  %176 = vmatpush1.msra.mxu0 0.0
  %177 = vmatprep.subr.mxu0 0.0
  %178 = vmatpush1.msra.mxu0 0.0
  %179 = vmatprep.subr.mxu0 0.0
  %180 = vmatpush1.msra.mxu0 0.0
  %181 = vmatprep.subr.mxu0 0.0
  %182 = vmatpush1.msra.mxu0 0.0
  %183 = vmatprep.subr.mxu0 0.0
  %184 = vmatpush1.msra.mxu0 0.0
  %185 = vmatprep.subr.mxu0 0.0
  %186 = vmatpush1.msra.mxu0 0.0
  %187 = vmatprep.subr.mxu0 0.0
  %188 = vmatpush1.msra.mxu0 0.0
  %189 = vmatprep.subr.mxu0 0.0
  %190 = vmatpush1.msra.mxu0 0.0
  %191 = vmatprep.subr.mxu0 0.0
  %192 = vmatpush1.msra.mxu0 0.0
  %193 = vmatprep.subr.mxu0 0.0
  %194 = vmatpush1.msra.mxu0 0.0
  %195 = vmatprep.subr.mxu0 0.0
  %196 = vmatpush1.msra.mxu0 0.0
  %197 = vmatprep.subr.mxu0 0.0
  %198 = vmatpush1.msra.mxu0 0.0
  %199 = vmatprep.subr.mxu0 0.0
  %200 = vmatpush1.msra.mxu0 0.0
  %201 = vmatprep.subr.mxu0 0.0
  %202 = vmatpush1.msra.mxu0 0.0
  %203 = vmatprep.subr.mxu0 0.0
  %204 = vmatpush1.msra.mxu0 0.0
  %205 = vmatprep.subr.mxu0 0.0
  %206 = vmatpush1.msra.mxu0 0.0
  %207 = vmatprep.subr.mxu0 0.0
  %208 = vmatpush1.msra.mxu0 0.0
  %209 = vmatprep.subr.mxu0 0.0
  %210 = vmatpush1.msra.mxu0 0.0
  %211 = vmatprep.subr.mxu0 0.0
  %212 = vmatpush1.msra.mxu0 0.0
  %213 = vmatprep.mubr.f32.mxu0 0.0
  %214 = vmatmul.mubr.f32.gmra.mrb[0].mxu0 %v147
  %v215 = vpop.f32.mrb[0].mxu0
  %v216 = vadd.f32 %v143, %v215
  %v217 = vpop.f32.mrb[0].mxu0
  %218 = vdwg.mxu0
  %v219 = vmax.f32 %v216, 0.0
  %v220 = vld [vmem:[%s5] sm:$0xff]
  %v221 = vld [vmem:[%s5 + $0x8] sm:$0xff]
  %v222 = vld [vmem:[%s5 + $0x10] sm:$0xff]
  %v223 = vld [vmem:[%s6] sm:$0x1]
  %v225 = vlaneseq
  %v226 = vshrl.u32 %v225, 7
  %v227 = vsub.s32 0, %v226
  %v228 = vrot.slane %v223, %v227
  %vm230 = vcmask 195584
  %v232 = vsel %vm230, %v219, 0
  %234 = vmatprep.subr.mxu0 0.0
  %235 = vmatpush1.msra.mxu0 %v220
  %236 = vmatprep.subr.mxu0 0.0
  %237 = vmatpush1.msra.mxu0 %v221
  %238 = vmatprep.subr.mxu0 0.0
  %239 = vmatpush1.msra.mxu0 %v222
  %240 = vmatprep.subr.mxu0 0.0
  %241 = vmatpush1.msra.mxu0 0.0
  %242 = vmatprep.subr.mxu0 0.0
  %243 = vmatpush1.msra.mxu0 0.0
  %244 = vmatprep.subr.mxu0 0.0
  %245 = vmatpush1.msra.mxu0 0.0
  %246 = vmatprep.subr.mxu0 0.0
  %247 = vmatpush1.msra.mxu0 0.0
  %248 = vmatprep.subr.mxu0 0.0
  %249 = vmatpush1.msra.mxu0 0.0
  %250 = vmatprep.subr.mxu0 0.0
  %251 = vmatpush1.msra.mxu0 0.0
  %252 = vmatprep.subr.mxu0 0.0
  %253 = vmatpush1.msra.mxu0 0.0
  %254 = vmatprep.subr.mxu0 0.0
  %255 = vmatpush1.msra.mxu0 0.0
  %256 = vmatprep.subr.mxu0 0.0
  %257 = vmatpush1.msra.mxu0 0.0
  %258 = vmatprep.subr.mxu0 0.0
  %259 = vmatpush1.msra.mxu0 0.0
  %260 = vmatprep.subr.mxu0 0.0
  %261 = vmatpush1.msra.mxu0 0.0
  %262 = vmatprep.subr.mxu0 0.0
  %263 = vmatpush1.msra.mxu0 0.0
  %264 = vmatprep.subr.mxu0 0.0
  %265 = vmatpush1.msra.mxu0 0.0
  %266 = vmatprep.subr.mxu0 0.0
  %267 = vmatpush1.msra.mxu0 0.0
  %268 = vmatprep.subr.mxu0 0.0
  %269 = vmatpush1.msra.mxu0 0.0
  %270 = vmatprep.subr.mxu0 0.0
  %271 = vmatpush1.msra.mxu0 0.0
  %272 = vmatprep.subr.mxu0 0.0
  %273 = vmatpush1.msra.mxu0 0.0
  %274 = vmatprep.subr.mxu0 0.0
  %275 = vmatpush1.msra.mxu0 0.0
  %276 = vmatprep.subr.mxu0 0.0
  %277 = vmatpush1.msra.mxu0 0.0
  %278 = vmatprep.subr.mxu0 0.0
  %279 = vmatpush1.msra.mxu0 0.0
  %280 = vmatprep.subr.mxu0 0.0
  %281 = vmatpush1.msra.mxu0 0.0
  %282 = vmatprep.subr.mxu0 0.0
  %283 = vmatpush1.msra.mxu0 0.0
  %284 = vmatprep.subr.mxu0 0.0
  %285 = vmatpush1.msra.mxu0 0.0
  %286 = vmatprep.subr.mxu0 0.0
  %287 = vmatpush1.msra.mxu0 0.0
  %288 = vmatprep.subr.mxu0 0.0
  %289 = vmatpush1.msra.mxu0 0.0
  %290 = vmatprep.subr.mxu0 0.0
  %291 = vmatpush1.msra.mxu0 0.0
  %292 = vmatprep.subr.mxu0 0.0
  %293 = vmatpush1.msra.mxu0 0.0
  %294 = vmatprep.subr.mxu0 0.0
  %295 = vmatpush1.msra.mxu0 0.0
  %296 = vmatprep.subr.mxu0 0.0
  %297 = vmatpush1.msra.mxu0 0.0
  %298 = vmatprep.mubr.f32.mxu0 0.0
  %299 = vmatmul.mubr.f32.gmra.mrb[0].mxu0 %v232
  %v300 = vpop.f32.mrb[0].mxu0
  %v301 = vadd.f32 %v228, %v300
  %v302 = vpop.f32.mrb[0].mxu0
  %303 = vdwg.mxu0
  %v304 = vld [vmem:[%s7] sm:$0xff]
  %v305 = vld [vmem:[%s7 + $0x8] sm:$0xff]
  %v306 = vld [vmem:[%s8] sm:$0x1]
  %v308 = vlaneseq
  %v309 = vshrl.u32 %v308, 7
  %v310 = vsub.s32 0, %v309
  %v311 = vrot.slane %v306, %v310
  %vm313 = vcmask 130048
  %v315 = vsel %vm313, %v301, 0
  %317 = vmatprep.subr.mxu0 0.0
  %318 = vmatpush1.msra.mxu0 %v304
  %319 = vmatprep.subr.mxu0 0.0
  %320 = vmatpush1.msra.mxu0 %v305
  %321 = vmatprep.subr.mxu0 0.0
  %322 = vmatpush1.msra.mxu0 0.0
  %323 = vmatprep.subr.mxu0 0.0
  %324 = vmatpush1.msra.mxu0 0.0
  %325 = vmatprep.subr.mxu0 0.0
  %326 = vmatpush1.msra.mxu0 0.0
  %327 = vmatprep.subr.mxu0 0.0
  %328 = vmatpush1.msra.mxu0 0.0
  %329 = vmatprep.subr.mxu0 0.0
  %330 = vmatpush1.msra.mxu0 0.0
  %331 = vmatprep.subr.mxu0 0.0
  %332 = vmatpush1.msra.mxu0 0.0
  %333 = vmatprep.subr.mxu0 0.0
  %334 = vmatpush1.msra.mxu0 0.0
  %335 = vmatprep.subr.mxu0 0.0
  %336 = vmatpush1.msra.mxu0 0.0
  %337 = vmatprep.subr.mxu0 0.0
  %338 = vmatpush1.msra.mxu0 0.0
  %339 = vmatprep.subr.mxu0 0.0
  %340 = vmatpush1.msra.mxu0 0.0
  %341 = vmatprep.subr.mxu0 0.0
  %342 = vmatpush1.msra.mxu0 0.0
  %343 = vmatprep.subr.mxu0 0.0
  %344 = vmatpush1.msra.mxu0 0.0
  %345 = vmatprep.subr.mxu0 0.0
  %346 = vmatpush1.msra.mxu0 0.0
  %347 = vmatprep.subr.mxu0 0.0
  %348 = vmatpush1.msra.mxu0 0.0
  %349 = vmatprep.subr.mxu0 0.0
  %350 = vmatpush1.msra.mxu0 0.0
  %351 = vmatprep.subr.mxu0 0.0
  %352 = vmatpush1.msra.mxu0 0.0
  %353 = vmatprep.subr.mxu0 0.0
  %354 = vmatpush1.msra.mxu0 0.0
  %355 = vmatprep.subr.mxu0 0.0
  %356 = vmatpush1.msra.mxu0 0.0
  %357 = vmatprep.subr.mxu0 0.0
  %358 = vmatpush1.msra.mxu0 0.0
  %359 = vmatprep.subr.mxu0 0.0
  %360 = vmatpush1.msra.mxu0 0.0
  %361 = vmatprep.subr.mxu0 0.0
  %362 = vmatpush1.msra.mxu0 0.0
  %363 = vmatprep.subr.mxu0 0.0
  %364 = vmatpush1.msra.mxu0 0.0
  %365 = vmatprep.subr.mxu0 0.0
  %366 = vmatpush1.msra.mxu0 0.0
  %367 = vmatprep.subr.mxu0 0.0
  %368 = vmatpush1.msra.mxu0 0.0
  %369 = vmatprep.subr.mxu0 0.0
  %370 = vmatpush1.msra.mxu0 0.0
  %371 = vmatprep.subr.mxu0 0.0
  %372 = vmatpush1.msra.mxu0 0.0
  %373 = vmatprep.subr.mxu0 0.0
  %374 = vmatpush1.msra.mxu0 0.0
  %375 = vmatprep.subr.mxu0 0.0
  %376 = vmatpush1.msra.mxu0 0.0
  %377 = vmatprep.subr.mxu0 0.0
  %378 = vmatpush1.msra.mxu0 0.0
  %379 = vmatprep.subr.mxu0 0.0
  %380 = vmatpush1.msra.mxu0 0.0
  %381 = vmatprep.mubr.f32.mxu0 0.0
  %382 = vmatmul.mubr.f32.gmra.mrb[0].mxu0 %v315
  %v383 = vpop.f32.mrb[0].mxu0
  %v384 = vadd.f32 %v311, %v383
  %v385 = vpop.f32.mrb[0].mxu0
  %386 = vdwg.mxu0
  %v387 = vmax.f32 %v384, 0.0
  %v388 = vld [vmem:[%s9] sm:$0xff]
  %v389 = vld [vmem:[%s9 + $0x8] sm:$0xff]
  %v390 = vld [vmem:[%s9 + $0x10] sm:$0xff]
  %v391 = vld [vmem:[%s10] sm:$0x1]
  %v393 = vlaneseq
  %v394 = vshrl.u32 %v393, 7
  %v395 = vsub.s32 0, %v394
  %v396 = vrot.slane %v391, %v395
  %v399 = vsel %vm230, %v387, 0
  %401 = vmatprep.subr.mxu0 0.0
  %402 = vmatpush1.msra.mxu0 %v388
  %403 = vmatprep.subr.mxu0 0.0
  %404 = vmatpush1.msra.mxu0 %v389
  %405 = vmatprep.subr.mxu0 0.0
  %406 = vmatpush1.msra.mxu0 %v390
  %407 = vmatprep.subr.mxu0 0.0
  %408 = vmatpush1.msra.mxu0 0.0
  %409 = vmatprep.subr.mxu0 0.0
  %410 = vmatpush1.msra.mxu0 0.0
  %411 = vmatprep.subr.mxu0 0.0
  %412 = vmatpush1.msra.mxu0 0.0
  %413 = vmatprep.subr.mxu0 0.0
  %414 = vmatpush1.msra.mxu0 0.0
  %415 = vmatprep.subr.mxu0 0.0
  %416 = vmatpush1.msra.mxu0 0.0
  %417 = vmatprep.subr.mxu0 0.0
  %418 = vmatpush1.msra.mxu0 0.0
  %419 = vmatprep.subr.mxu0 0.0
  %420 = vmatpush1.msra.mxu0 0.0
  %421 = vmatprep.subr.mxu0 0.0
  %422 = vmatpush1.msra.mxu0 0.0
  %423 = vmatprep.subr.mxu0 0.0
  %424 = vmatpush1.msra.mxu0 0.0
  %425 = vmatprep.subr.mxu0 0.0
  %426 = vmatpush1.msra.mxu0 0.0
  %427 = vmatprep.subr.mxu0 0.0
  %428 = vmatpush1.msra.mxu0 0.0
  %429 = vmatprep.subr.mxu0 0.0
  %430 = vmatpush1.msra.mxu0 0.0
  %431 = vmatprep.subr.mxu0 0.0
  %432 = vmatpush1.msra.mxu0 0.0
  %433 = vmatprep.subr.mxu0 0.0
  %434 = vmatpush1.msra.mxu0 0.0
  %435 = vmatprep.subr.mxu0 0.0
  %436 = vmatpush1.msra.mxu0 0.0
  %437 = vmatprep.subr.mxu0 0.0
  %438 = vmatpush1.msra.mxu0 0.0
  %439 = vmatprep.subr.mxu0 0.0
  %440 = vmatpush1.msra.mxu0 0.0
  %441 = vmatprep.subr.mxu0 0.0
  %442 = vmatpush1.msra.mxu0 0.0
  %443 = vmatprep.subr.mxu0 0.0
  %444 = vmatpush1.msra.mxu0 0.0
  %445 = vmatprep.subr.mxu0 0.0
  %446 = vmatpush1.msra.mxu0 0.0
  %447 = vmatprep.subr.mxu0 0.0
  %448 = vmatpush1.msra.mxu0 0.0
  %449 = vmatprep.subr.mxu0 0.0
  %450 = vmatpush1.msra.mxu0 0.0
  %451 = vmatprep.subr.mxu0 0.0
  %452 = vmatpush1.msra.mxu0 0.0
  %453 = vmatprep.subr.mxu0 0.0
  %454 = vmatpush1.msra.mxu0 0.0
  %455 = vmatprep.subr.mxu0 0.0
  %456 = vmatpush1.msra.mxu0 0.0
  %457 = vmatprep.subr.mxu0 0.0
  %458 = vmatpush1.msra.mxu0 0.0
  %459 = vmatprep.subr.mxu0 0.0
  %460 = vmatpush1.msra.mxu0 0.0
  %461 = vmatprep.subr.mxu0 0.0
  %462 = vmatpush1.msra.mxu0 0.0
  %463 = vmatprep.subr.mxu0 0.0
  %464 = vmatpush1.msra.mxu0 0.0
  %465 = vmatprep.mubr.f32.mxu0 0.0
  %466 = vmatmul.mubr.f32.gmra.mrb[0].mxu0 %v399
  %v467 = vpop.f32.mrb[0].mxu0
  %v468 = vadd.f32 %v396, %v467
  %v469 = vpop.f32.mrb[0].mxu0
  %470 = vdwg.mxu0
  %v471 = vmax.f32 %v468, 0.0
  %v472 = vld [vmem:[%s11] sm:$0xff]
  %v473 = vld [vmem:[%s11 + $0x8] sm:$0xff]
  %v474 = vld [vmem:[%s11 + $0x10] sm:$0xff]
  %v475 = vld [vmem:[%s11 + $0x18] sm:$0xff]
  %v476 = vld [vmem:[%s11 + $0x20] sm:$0xff]
  %v477 = vld [vmem:[%s12] sm:$0x1]
  %v479 = vlaneseq
  %v480 = vshrl.u32 %v479, 7
  %v481 = vsub.s32 0, %v480
  %v482 = vrot.slane %v477, %v481
  %v485 = vsel %vm145, %v471, 0
  %487 = vmatprep.subr.mxu0 0.0
  %488 = vmatpush1.msra.mxu0 %v472
  %489 = vmatprep.subr.mxu0 0.0
  %490 = vmatpush1.msra.mxu0 %v473
  %491 = vmatprep.subr.mxu0 0.0
  %492 = vmatpush1.msra.mxu0 %v474
  %493 = vmatprep.subr.mxu0 0.0
  %494 = vmatpush1.msra.mxu0 %v475
  %495 = vmatprep.subr.mxu0 0.0
  %496 = vmatpush1.msra.mxu0 %v476
  %497 = vmatprep.subr.mxu0 0.0
  %498 = vmatpush1.msra.mxu0 0.0
  %499 = vmatprep.subr.mxu0 0.0
  %500 = vmatpush1.msra.mxu0 0.0
  %501 = vmatprep.subr.mxu0 0.0
  %502 = vmatpush1.msra.mxu0 0.0
  %503 = vmatprep.subr.mxu0 0.0
  %504 = vmatpush1.msra.mxu0 0.0
  %505 = vmatprep.subr.mxu0 0.0
  %506 = vmatpush1.msra.mxu0 0.0
  %507 = vmatprep.subr.mxu0 0.0
  %508 = vmatpush1.msra.mxu0 0.0
  %509 = vmatprep.subr.mxu0 0.0
  %510 = vmatpush1.msra.mxu0 0.0
  %511 = vmatprep.subr.mxu0 0.0
  %512 = vmatpush1.msra.mxu0 0.0
  %513 = vmatprep.subr.mxu0 0.0
  %514 = vmatpush1.msra.mxu0 0.0
  %515 = vmatprep.subr.mxu0 0.0
  %516 = vmatpush1.msra.mxu0 0.0
  %517 = vmatprep.subr.mxu0 0.0
  %518 = vmatpush1.msra.mxu0 0.0
  %519 = vmatprep.subr.mxu0 0.0
  %520 = vmatpush1.msra.mxu0 0.0
  %521 = vmatprep.subr.mxu0 0.0
  %522 = vmatpush1.msra.mxu0 0.0
  %523 = vmatprep.subr.mxu0 0.0
  %524 = vmatpush1.msra.mxu0 0.0
  %525 = vmatprep.subr.mxu0 0.0
  %526 = vmatpush1.msra.mxu0 0.0
  %527 = vmatprep.subr.mxu0 0.0
  %528 = vmatpush1.msra.mxu0 0.0
  %529 = vmatprep.subr.mxu0 0.0
  %530 = vmatpush1.msra.mxu0 0.0
  %531 = vmatprep.subr.mxu0 0.0
  %532 = vmatpush1.msra.mxu0 0.0
  %533 = vmatprep.subr.mxu0 0.0
  %534 = vmatpush1.msra.mxu0 0.0
  %535 = vmatprep.subr.mxu0 0.0
  %536 = vmatpush1.msra.mxu0 0.0
  %537 = vmatprep.subr.mxu0 0.0
  %538 = vmatpush1.msra.mxu0 0.0
  %539 = vmatprep.subr.mxu0 0.0
  %540 = vmatpush1.msra.mxu0 0.0
  %541 = vmatprep.subr.mxu0 0.0
  %542 = vmatpush1.msra.mxu0 0.0
  %543 = vmatprep.subr.mxu0 0.0
  %544 = vmatpush1.msra.mxu0 0.0
  %545 = vmatprep.subr.mxu0 0.0
  %546 = vmatpush1.msra.mxu0 0.0
  %547 = vmatprep.subr.mxu0 0.0
  %548 = vmatpush1.msra.mxu0 0.0
  %549 = vmatprep.subr.mxu0 0.0
  %550 = vmatpush1.msra.mxu0 0.0
  %551 = vmatprep.mubr.f32.mxu0 0.0
  %552 = vmatmul.mubr.f32.gmra.mrb[0].mxu0 %v485
  %v553 = vpop.f32.mrb[0].mxu0
  %v554 = vadd.f32 %v482, %v553
  %v555 = vpop.f32.mrb[0].mxu0
  %556 = vdwg.mxu0
  %558 = vrot.lane.b32.xlu0 %v554, 16
  %v559 = vpop.permute.xlu0 %558
  %v561 = vsel %vm313, %v301, %v559
  %vm562 = vcmask 523264
  %563 = vst.msk [vmem:[%s13] sm:$0xff] %vm562, %v561
  // Predicated region
  $region54: #{ae_forward.1} parent=0 // pred_check
    _
  $region55: #{ae_forward.1} parent=0 // pred_check_branch
    %565 = sbr.rel (0) target = $region57
  $region56: #{ae_forward.1} parent=0 // pred_region
    _
  $region57: #{ae_forward.1} parent=0 // pred_fallthru
    _
  // Predicated region
  $region58: #{ae_forward.1} parent=0 // pred_check
    _
  $region59: #{ae_forward.1} parent=0 // pred_check_branch
    %567 = sbr.rel (0) target = $region61
  $region60: #{ae_forward.1} parent=0 // pred_region
    _
  $region61: #{ae_forward.1} parent=0 // pred_fallthru
    _

</llo_original>
